<compile_context>
chip_gen: v7x
topology: tpu7x:2x2x1
jax: 0.10.0
libtpu: 0.0.40
codegen_flags: <defaults>
</compile_context>

<pallas_src>
import jax
import jax.numpy as jnp
from jax.experimental import pallas as pl
from jax.experimental.pallas import tpu as pltpu


def _affine_kernel(w_ref, b_ref, x_ref, o_ref):
    # w_ref, b_ref: (1, 1) scalars in SMEM; x_ref/o_ref: (tile_r, lane) VMEM tiles
    w = w_ref[0, 0]
    b = b_ref[0, 0]
    o_ref[...] = (x_ref[...] * w + b).astype(o_ref.dtype)


# Below ~2M elements a single fused XLA elementwise op (already at HBM
# roofline) beats the pallas_call dispatch + relayout overhead.
_PALLAS_MIN_ELEMS = 1 << 21
_MAX_LANE = 2048                 # widest lane-dense minor dim we try
_TILE_BYTES = 4 * 1024 * 1024    # 4 MiB tiles -> 16 MiB double-buffered in+out
# TODO(synk): per-chip tuning (8 MiB tiles / 64 MiB vmem on v6e) would need a
# runtime chip query; the 4 MiB / 32 MiB config is safe on v5e, v6e and v7x.


def _pick_lane(total):
    """Largest multiple-of-128 divisor of `total` that is <= _MAX_LANE (0 if none)."""
    for lane in range(_MAX_LANE, 127, -128):
        if total % lane == 0:
            return lane
    return 0


def _pick_tile_r(rows, lane, itemsize):
    if rows < 8:
        # block covers the full (short) rows dim -> legal even if not mult-of-8
        return rows
    tile_r = max(8, (_TILE_BYTES // (lane * itemsize)) // 8 * 8)
    tile_r = min(tile_r, (rows // 8) * 8)
    # v7x megacore: guarantee >= 2 grid blocks so both TensorCores stream.
    if pl.cdiv(rows, tile_r) < 2 and tile_r >= 16:
        tile_r = max(8, (tile_r // 2) // 8 * 8)
    return tile_r


def _run_pallas(x2d, w_scalar, b_scalar, out_dtype):
    rows, lane = x2d.shape
    itemsize = jnp.dtype(x2d.dtype).itemsize
    tile_r = _pick_tile_r(rows, lane, itemsize)
    grid = (pl.cdiv(rows, tile_r),)   # ragged final block is masked by Pallas
    nbytes = rows * lane * itemsize
    return pl.pallas_call(
        _affine_kernel,
        out_shape=jax.ShapeDtypeStruct((rows, lane), out_dtype),
        grid=grid,
        in_specs=[
            pl.BlockSpec(memory_space=pltpu.SMEM),              # w scalar
            pl.BlockSpec(memory_space=pltpu.SMEM),              # b scalar
            pl.BlockSpec((tile_r, lane), lambda i: (i, 0)),     # x tile
        ],
        out_specs=pl.BlockSpec((tile_r, lane), lambda i: (i, 0)),
        compiler_params=pltpu.CompilerParams(
            dimension_semantics=("parallel",),
            vmem_limit_bytes=32 * 1024 * 1024,
        ),
        cost_estimate=pl.CostEstimate(
            flops=2 * rows * lane,
            bytes_accessed=2 * nbytes,
            transcendentals=0,
        ),
    )(w_scalar.reshape(1, 1), b_scalar.reshape(1, 1), x2d)


def conv1x1_forward(x, weight, bias, *, force_pallas=False):
    """Equivalent to PyTorch nn.Conv2d(1, 1, kernel_size=1)(x).

    x: (N, 1, H, W). weight: (1, 1, 1, 1). bias: (1,).
    """
    N, C, H, W = x.shape
    assert C == 1, "module has in_channels=1"

    w_scalar = weight.reshape(()).astype(jnp.float32)
    b_scalar = bias.reshape(()).astype(jnp.float32)

    total = x.size
    lane = _pick_lane(total)

    # XLA fast path: tiny inputs (fixed dispatch overhead dominates) or ragged
    # totals that would require a full-tensor pad + slice copy outside the
    # kernel (each such copy is an extra HBM pass on a memory-bound op).
    if not force_pallas and (total < _PALLAS_MIN_ELEMS or lane == 0):
        return (x * w_scalar + b_scalar).astype(x.dtype)

    if lane != 0:
        # Zero-copy path: reshape NCHW straight to a lane-dense (rows, lane)
        # slab -- no pad, no output slice, just layout-free reshapes.
        rows = total // lane
        out2d = _run_pallas(x.reshape(rows, lane), w_scalar, b_scalar, x.dtype)
        return out2d.reshape(N, C, H, W)

    # Pad fallback (only reachable with force_pallas): total % 128 != 0.
    lane = 128
    rows = pl.cdiv(total, lane)
    flat = jnp.pad(x.reshape(-1), (0, rows * lane - total))
    out2d = _run_pallas(flat.reshape(rows, lane), w_scalar, b_scalar, x.dtype)
    return out2d.reshape(-1)[:total].reshape(N, C, H, W)


if __name__ == "__main__":
    key = jax.random.PRNGKey(0)
    kx, kw, kb, kx2, kx3 = jax.random.split(key, 5)

    # Deterministic parameters (Conv2d(1,1,1): weight (1,1,1,1), bias (1,))
    weight = jax.random.normal(kw, (1, 1, 1, 1), dtype=jnp.float32) * 0.5
    bias = jax.random.normal(kb, (1,), dtype=jnp.float32) * 0.1

    def ref_fn(x):
        return x * weight.reshape(()) + bias.reshape(())

    # Case 1: small, total divisible by 128 -> zero-copy lane-dense path.
    x = jax.random.normal(kx, (2, 1, 16, 16), dtype=jnp.float32)
    out = jax.block_until_ready(conv1x1_forward(x, weight, bias, force_pallas=True))
    assert jnp.allclose(out, ref_fn(x), atol=1e-6), "mismatch (small aligned)"

    # Case 2: ragged element count (total % 128 != 0) -> pad fallback path.
    x2 = jax.random.normal(kx2, (3, 1, 40, 24), dtype=jnp.float32)
    out2 = jax.block_until_ready(conv1x1_forward(x2, weight, bias, force_pallas=True))
    assert jnp.allclose(out2, ref_fn(x2), atol=1e-6), "mismatch (ragged)"

    # Case 3: enough rows to exercise the multi-block (>=2 grid steps) split.
    x3 = jax.random.normal(kx3, (1, 1, 256, 128), dtype=jnp.float32)
    out3 = jax.block_until_ready(conv1x1_forward(x3, weight, bias, force_pallas=True))
    assert jnp.allclose(out3, ref_fn(x3), atol=1e-6), "mismatch (multi-block)"

    print("KERNEL_OK")
</pallas_src>

<mosaic_0001>
module attributes {stable_mosaic.version = 11 : i64} {
  func.func @_affine_kernel(%arg0: i32, %arg1: memref<1x1xf32, #tpu.memory_space<smem>>, %arg2: memref<1x1xf32, #tpu.memory_space<smem>>, %arg3: memref<1x512xf32, #tpu.memory_space<vmem>>, %arg4: memref<1x512xf32, #tpu.memory_space<vmem>>) attributes {dimension_semantics = [#tpu.dimension_semantics<parallel>], iteration_bounds = array<i64: 1>, scalar_prefetch = 0 : i64, scratch_operands = 0 : i64, tpu.core_type = #tpu.core_type<tc>, window_params = [{transform_indices = @transform_0, window_bounds = array<i64: 1, 1>}, {transform_indices = @transform_1, window_bounds = array<i64: 1, 1>}, {transform_indices = @transform_2, window_bounds = array<i64: 1, 512>}, {transform_indices = @transform_3, window_bounds = array<i64: 1, 512>}]} {
    %c0 = arith.constant 0 : index
    %c0_0 = arith.constant 0 : index
    %0 = memref.load %arg1[%c0, %c0_0] : memref<1x1xf32, #tpu.memory_space<smem>>
    %c0_1 = arith.constant 0 : index
    %c0_2 = arith.constant 0 : index
    %1 = memref.load %arg2[%c0_1, %c0_2] : memref<1x1xf32, #tpu.memory_space<smem>>
    %c0_3 = arith.constant 0 : index
    %c0_4 = arith.constant 0 : index
    %2 = vector.load %arg3[%c0_3, %c0_4] : memref<1x512xf32, #tpu.memory_space<vmem>>, vector<1x512xf32>
    %3 = vector.broadcast %0 : f32 to vector<1x512xf32>
    %4 = arith.mulf %2, %3 : vector<1x512xf32>
    %5 = vector.broadcast %1 : f32 to vector<1x512xf32>
    %6 = arith.addf %4, %5 : vector<1x512xf32>
    %c0_5 = arith.constant 0 : index
    %c0_6 = arith.constant 0 : index
    %7 = vector.load %arg4[%c0_5, %c0_6] : memref<1x512xf32, #tpu.memory_space<vmem>>, vector<1x512xf32>
    tpu.vector_store %arg4[%c0_5, %c0_6], %6 {strides = array<i32>} : memref<1x512xf32, #tpu.memory_space<vmem>>, vector<1x512xf32>,
    return
  }
  func.func @transform_0(%arg0: i32) -> (i32, i32) {
    %c0_i32 = arith.constant 0 : i32
    %c0_i32_0 = arith.constant 0 : i32
    %c0_i32_1 = arith.constant 0 : i32
    return %c0_i32, %c0_i32_0 : i32, i32
  }
  func.func @transform_1(%arg0: i32) -> (i32, i32) {
    %c0_i32 = arith.constant 0 : i32
    %c0_i32_0 = arith.constant 0 : i32
    %c0_i32_1 = arith.constant 0 : i32
    return %c0_i32, %c0_i32_0 : i32, i32
  }
  func.func @transform_2(%arg0: i32) -> (i32, i32) {
    %c0_i32 = arith.constant 0 : i32
    %c0_i32_0 = arith.constant 0 : i32
    return %arg0, %c0_i32 : i32, i32
  }
  func.func @transform_3(%arg0: i32) -> (i32, i32) {
    %c0_i32 = arith.constant 0 : i32
    %c0_i32_0 = arith.constant 0 : i32
    return %arg0, %c0_i32 : i32, i32
  }
}

</mosaic_0001>

<llo_original>
// kernel: tpu_custom_call.1
$region0: #{tpu_custom_call.1}
  #allocation0 [shape = 'u32[]', space=smem, size = 0x4, offset = 0x4, fixed_abs, tag = 'smem constant byte address 0x4 - core index']
  #allocation1 [shape = 'u32[144,128]{1,0:T(1,128)}', space=vmem, size = 0x12000, scoped, tag = 'internal scratch']
  #allocation2 [shape = 'f32[1,1]{1,0:T(1,128)S(6)}', space=smem, size = 0x200, scoped, tag = 'scoped memory for tpu_custom_call.1']
  #allocation3 [shape = 'f32[1,1]{1,0:T(1,128)S(6)}', space=smem, size = 0x200, scoped, tag = 'scoped memory for tpu_custom_call.1']
  %s0 = inlined_call_operand.<no memory space> [shape: f32[1,1], index: 0, kind: input, shape index: {}]
  %s1 = inlined_call_operand.<no memory space> [shape: f32[1,1], index: 1, kind: input, shape index: {}]
  %s2 = inlined_call_operand.vmem [shape: f32[1,512], index: 2, kind: input, shape index: {}]
  %s3 = inlined_call_operand.hbm [shape: f32[1,512], index: 3, kind: output, shape index: {}]
  %s4 = sld [smem:[#allocation0]]
  $region22: #{tpu_custom_call.1} parent=0
    _
  %s6 = ssub.s32 1, %s4
  %s7 = scalar_select 0, %s6, %s4
  %8 = sst [smem:[#allocation2]] %s0
  %9 = sst [smem:[#allocation3]] %s1
  $region1: #{tpu_custom_call.1} parent=0
    #allocation4 [shape = 'u8[2048]{0}', space=vmem, size = 0x800, scoped, tag = 'output window, operand 0, single buffered']
    #allocation5 [shape = 's32[1]{0}', space=sflag, size = 0x4, scoped, tag = 'scoped memory for tpu_custom_call.1']
    %10 = vsyncpa [#allocation5], 0
    // Predicated region
    $region2: #{tpu_custom_call.1} parent=1 // pred_check
      _
    $region3: #{tpu_custom_call.1} parent=1 // pred_check_branch
      %12 = sbr.rel (0) target = $region5
    $region4: #{tpu_custom_call.1} parent=1 // pred_region
      _
    $region5: #{tpu_custom_call.1} parent=1 // pred_fallthru
      _
    // Predicated region
    $region6: #{tpu_custom_call.1} parent=1 // pred_check
      _
    $region7: #{tpu_custom_call.1} parent=1 // pred_check_branch
      %14 = sbr.rel (0) target = $region9
    $region8: #{tpu_custom_call.1} parent=1 // pred_region
      _
    $region9: #{tpu_custom_call.1} parent=1 // pred_fallthru
      _
    // Predicated region
    $region10: #{tpu_custom_call.1} parent=1 // pred_check
      _
    $region11: #{tpu_custom_call.1} parent=1 // pred_check_branch
      %16 = sbr.rel (0) target = $region13
    $region12: #{tpu_custom_call.1} parent=1 // pred_region
      _
    $region13: #{tpu_custom_call.1} parent=1 // pred_fallthru
      _
    %s17 = sld [smem:[#allocation2]]
    %s18 = sld [smem:[#allocation3]]
    %v19 = vld [vmem:[%s2] sm:$0xf]
    %v20 = vstv %s17
    %v21 = vmul.f32 %v19, %v20
    %v22 = vstv %s18
    %v23 = vadd.f32 %v21, %v22
    %v24 = vlaneseq
    %vm25 = vcmp.ge.s32.totalorder %v24, 0
    %vm26 = vcmp.lt.s32.totalorder %v24, 512
    %vm27 = vmand %vm25, %vm26
    %28 = vst.msk [vmem:[#allocation4] sm:$0xf] %vm27, %v23
    // Predicated region
    $region14: #{tpu_custom_call.1} parent=1 // pred_check
      _
    $region15: #{tpu_custom_call.1} parent=1 // pred_check_branch
      %30 = sbr.rel (0) target = $region17
    $region16: #{tpu_custom_call.1} parent=1 // pred_region
      %s32 = ssub.s32 64, 64
      %33 = vsyncadd [#allocation5], %s32
      %s35 = sshll.u32 [#allocation4], 4
      %s36 = int_to_ptr.vmem [resolvable:$true] %s35
      %38 = dma.vmem_to_hbm [thread:$0]  %s36, 64, %s3, [#allocation5]
    $region17: #{tpu_custom_call.1} parent=1 // pred_fallthru
      _
    // Predicated region
    $region18: #{tpu_custom_call.1} parent=1 // pred_check
      _
    $region19: #{tpu_custom_call.1} parent=1 // pred_check_branch
      %40 = sbr.rel (0) target = $region21
    $region20: #{tpu_custom_call.1} parent=1 // pred_region
      %41 = dma.done [#allocation5], 64
    $region21: #{tpu_custom_call.1} parent=1 // pred_fallthru
      _
    %42 = vsyncpa [#allocation5], 1

</llo_original>
